<compile_context>
chip_gen: v7x
topology: tpu7x:2x2x1
jax: 0.10.0
libtpu: 0.0.40
codegen_flags: <defaults>
</compile_context>

<pallas_src>
import functools

import jax
import jax.numpy as jnp
from jax.experimental import pallas as pl
from jax.experimental.pallas import tpu as pltpu

EPSILON = 1e-4

_SMALL_N = 64 * 1024     # below this, XLA's fused elementwise expr wins
_SUBLANE = 8
_LANE = 128


def _are_kernel(pred_ref, target_ref, out_ref, *, epsilon):
    p = pred_ref[...]
    t = target_ref[...]
    # Purely HBM-bound elementwise stream: the exact VPU divide is hidden under
    # DMA, so keep bit-exact semantics vs. the PyTorch reference.
    # Note: in partial (masked) last blocks the out-of-bounds lanes may compute
    # inf/NaN from garbage/(garbage+eps); they are masked on the store and never
    # reach HBM, which is the intended Pallas partial-block behavior.
    out_ref[...] = jnp.abs((p - t) / (t + epsilon))


def _round_up(x, m):
    return ((x + m - 1) // m) * m


def _per_operand_block_bytes():
    # Gen-gate the per-operand block size so 3 streams x 2 pipeline buffers stay
    # under the default scoped-VMEM limit (16 MiB v5e / 32 MiB v6e, v7x).
    try:
        kind = jax.devices()[0].device_kind.lower()
    except Exception:
        kind = ""
    if "v6" in kind or "v7" in kind:
        return 4 * 1024 * 1024
    return 2 * 1024 * 1024   # v5e / older / unknown: conservative, always fits


def absolute_relative_error_loss(pred, target, epsilon=EPSILON):
    assert pred.shape == target.shape, "pred/target must have identical shapes"
    shape = pred.shape
    n = pred.size

    # Small or low-rank inputs: let XLA fuse the elementwise expression
    # (zero extra HBM passes, no launch overhead).
    if n < _SMALL_N or pred.ndim < 2:
        return jnp.abs((pred - target) / (target + epsilon))

    # Layout-preserving 3-D view: collapse leading dims only; the trailing
    # (sublane, lane) dims keep their original extents, so no physical
    # relayout / copy is emitted by the reshape.
    H, W = shape[-2], shape[-1]
    L = n // (H * W)
    p3 = pred.reshape(L, H, W)
    t3 = target.reshape(L, H, W)

    itemsize = jnp.dtype(pred.dtype).itemsize
    budget_bytes = _per_operand_block_bytes()
    budget_elems = max(_SUBLANE * _LANE, budget_bytes // itemsize)

    # --- choose block shape (bl, bh, bw). Trailing block dims are either the
    # full array extent or (8,128)-aligned; partial last blocks are masked by
    # Pallas. Budget accounting uses the lane/sublane-padded VMEM footprint. ---
    w_phys = _round_up(W, _LANE)
    if w_phys <= budget_elems:
        bw = W
        rows_budget = max(1, budget_elems // w_phys)
        if H <= _SUBLANE or _round_up(H, _SUBLANE) <= rows_budget:
            bh = H
            bl = min(L, max(1, budget_elems // (_round_up(H, _SUBLANE) * w_phys)))
        else:
            bh = max(_SUBLANE, (rows_budget // _SUBLANE) * _SUBLANE)
            bl = 1
    else:
        # A single full-width row exceeds the budget: block along lanes too.
        bh = H if H < _SUBLANE else _SUBLANE
        bl = 1
        bw = max(_LANE,
                 (budget_elems // _round_up(bh, _SUBLANE) // _LANE) * _LANE)

    grid = (pl.cdiv(L, bl), pl.cdiv(H, bh), pl.cdiv(W, bw))
    # v7x has 2 TensorCores that shard "parallel" grid axes; ensure >= 2 grid
    # steps so neither core idles. Negligible cost on single-core generations.
    if grid == (1, 1, 1):
        if L >= 2:
            bl = pl.cdiv(L, 2)
        elif H > _SUBLANE:
            bh = min(H, _round_up(pl.cdiv(H, 2), _SUBLANE))
        elif W > _LANE:
            bw = min(W, _round_up(pl.cdiv(W, 2), _LANE))
        grid = (pl.cdiv(L, bl), pl.cdiv(H, bh), pl.cdiv(W, bw))

    spec = pl.BlockSpec((bl, bh, bw), lambda i, j, k: (i, j, k))

    cost = pl.CostEstimate(
        flops=3 * n,                     # sub + add + div (abs ~ free)
        transcendentals=0,
        bytes_accessed=3 * n * itemsize,
    )

    out3 = pl.pallas_call(
        functools.partial(_are_kernel, epsilon=epsilon),
        out_shape=jax.ShapeDtypeStruct((L, H, W), pred.dtype),
        grid=grid,
        in_specs=[spec, spec],
        out_specs=spec,
        compiler_params=pltpu.CompilerParams(
            dimension_semantics=("parallel", "parallel", "parallel"),
        ),
        cost_estimate=cost,
    )(p3, t3)

    # Leading-dim-only reshape back to the original shape: free bitcast.
    return out3.reshape(shape)


def _check(shape, key):
    k1, k2 = jax.random.split(key)
    pred = jax.random.normal(k1, shape, dtype=jnp.float32)
    # keep the denominator away from -epsilon so the reference compare is stable
    target = jax.random.normal(k2, shape, dtype=jnp.float32) + 3.0
    out = jax.block_until_ready(absolute_relative_error_loss(pred, target))
    ref = jnp.abs((pred - target) / (target + EPSILON))
    assert out.shape == shape
    assert jnp.allclose(out, ref, atol=1e-6, rtol=1e-6), f"mismatch for {shape}"


if __name__ == "__main__":
    key = jax.random.PRNGKey(0)
    k0, k1, k2, k3, k4 = jax.random.split(key, 5)

    # primary small NCHW-style input consistent with the module (fallback path)
    _check((2, 4, 16, 16), k0)
    # lane-aligned last dim -> Pallas path, multi-step grid
    _check((2, 4, 128, 128), k1)
    # non-128-aligned last dim -> Pallas N-D path (masked lanes, no relayout)
    _check((8, 16, 32, 48), k2)
    # 2-D input, forced >=2 grid steps by splitting the sublane dim
    _check((512, 384), k3)
    # 1-D input -> low-rank fallback path
    _check((70000,), k4)

    print("KERNEL_OK")
</pallas_src>

<mosaic_0001>
module attributes {stable_mosaic.version = 11 : i64} {
  func.func @_are_kernel(%arg0: i32, %arg1: i32, %arg2: i32, %arg3: memref<4x128x128xf32, #tpu.memory_space<vmem>>, %arg4: memref<4x128x128xf32, #tpu.memory_space<vmem>>, %arg5: memref<4x128x128xf32, #tpu.memory_space<vmem>>) attributes {dimension_semantics = [#tpu.dimension_semantics<parallel>, #tpu.dimension_semantics<parallel>, #tpu.dimension_semantics<parallel>], iteration_bounds = array<i64: 2, 1, 1>, scalar_prefetch = 0 : i64, scratch_operands = 0 : i64, tpu.core_type = #tpu.core_type<tc>, window_params = [{transform_indices = @transform_0, window_bounds = array<i64: 4, 128, 128>}, {transform_indices = @transform_1, window_bounds = array<i64: 4, 128, 128>}, {transform_indices = @transform_2, window_bounds = array<i64: 4, 128, 128>}]} {
    %c0 = arith.constant 0 : index
    %c0_0 = arith.constant 0 : index
    %c0_1 = arith.constant 0 : index
    %0 = vector.load %arg3[%c0, %c0_0, %c0_1] : memref<4x128x128xf32, #tpu.memory_space<vmem>>, vector<4x128x128xf32>
    %c0_2 = arith.constant 0 : index
    %c0_3 = arith.constant 0 : index
    %c0_4 = arith.constant 0 : index
    %1 = vector.load %arg4[%c0_2, %c0_3, %c0_4] : memref<4x128x128xf32, #tpu.memory_space<vmem>>, vector<4x128x128xf32>
    %2 = arith.subf %0, %1 : vector<4x128x128xf32>
    %cst = arith.constant 9.99999974E-5 : f32
    %3 = vector.broadcast %cst : f32 to vector<4x128x128xf32>
    %4 = arith.addf %1, %3 : vector<4x128x128xf32>
    %5 = arith.divf %2, %4 : vector<4x128x128xf32>
    %6 = math.absf %5 : vector<4x128x128xf32>
    %c0_5 = arith.constant 0 : index
    %c0_6 = arith.constant 0 : index
    %c0_7 = arith.constant 0 : index
    %7 = vector.load %arg5[%c0_5, %c0_6, %c0_7] : memref<4x128x128xf32, #tpu.memory_space<vmem>>, vector<4x128x128xf32>
    tpu.vector_store %arg5[%c0_5, %c0_6, %c0_7], %6 {strides = array<i32>} : memref<4x128x128xf32, #tpu.memory_space<vmem>>, vector<4x128x128xf32>,
    return
  }
  func.func @transform_0(%arg0: i32, %arg1: i32, %arg2: i32) -> (i32, i32, i32) {
    %c0_i32 = arith.constant 0 : i32
    return %arg0, %arg1, %arg2 : i32, i32, i32
  }
  func.func @transform_1(%arg0: i32, %arg1: i32, %arg2: i32) -> (i32, i32, i32) {
    %c0_i32 = arith.constant 0 : i32
    return %arg0, %arg1, %arg2 : i32, i32, i32
  }
  func.func @transform_2(%arg0: i32, %arg1: i32, %arg2: i32) -> (i32, i32, i32) {
    %c0_i32 = arith.constant 0 : i32
    return %arg0, %arg1, %arg2 : i32, i32, i32
  }
}

</mosaic_0001>

<llo_original>
// kernel: tpu_custom_call.1
$region0: #{tpu_custom_call.1}
  #allocation0 [shape = 'u32[]', space=smem, size = 0x4, offset = 0x4, fixed_abs, tag = 'smem constant byte address 0x4 - core index']
  #allocation1 [shape = 'u32[144,128]{1,0:T(1,128)}', space=vmem, size = 0x12000, scoped, tag = 'internal scratch']
  %s0 = inlined_call_operand.hbm [shape: f32[8,128,128], index: 0, kind: input, shape index: {}]
  %s1 = inlined_call_operand.hbm [shape: f32[8,128,128], index: 1, kind: input, shape index: {}]
  %s2 = inlined_call_operand.hbm [shape: f32[8,128,128], index: 2, kind: output, shape index: {}]
  %s3 = sld [smem:[#allocation0]]
  $region49: #{tpu_custom_call.1} parent=0
    _
  %s5 = ssub.s32 1, %s3
  %s6 = scalar_select 0, %s5, %s3
  $region1: #{tpu_custom_call.1} parent=0
    #allocation2 [shape = 'u8[524288]{0}', space=vmem, size = 0x80000, scoped, tag = 'input window, operand 0']
    #allocation3 [shape = 's32[2]{0}', space=sflag, size = 0x8, scoped, tag = 'scoped memory for tpu_custom_call.1']
    #allocation4 [shape = 's32[2]{0}', space=sflag, size = 0x8, scoped, tag = 'scoped memory for tpu_custom_call.1']
    #allocation5 [shape = 'u8[524288]{0}', space=vmem, size = 0x80000, scoped, tag = 'input window, operand 1']
    #allocation6 [shape = 's32[2]{0}', space=sflag, size = 0x8, scoped, tag = 'scoped memory for tpu_custom_call.1']
    #allocation7 [shape = 'u8[524288]{0}', space=vmem, size = 0x80000, scoped, tag = 'output window, operand 0']
    %7 = vsyncpa [#allocation3], 0
    %s8 = scalar_lea.sflag [#allocation3], 1
    %9 = vsyncpa %s8, 0
    %10 = vsyncpa [#allocation6], 0
    %s11 = scalar_lea.sflag [#allocation6], 1
    %12 = vsyncpa %s11, 0
    %13 = vsyncpa [#allocation4], 0
    %s14 = scalar_lea.sflag [#allocation4], 1
    %15 = vsyncpa %s14, 0
    loop: start=0, step=1, limit=4
    $region2: #{tpu_custom_call.1} parent=1 // loop_pre_header
      _
    $region3: #{tpu_custom_call.1} parent=1 // loop_header
      %s17 = sphi 0, %s21
      %p18 = scmp.ge.s32.totalorder %s17, 4
      %s24 = sphi 0, %s43
      %s25 = sphi 0, %s39
      %s26 = sphi 0, %s35
      %s27 = sphi 0, %s24
      %s28 = sphi 0, %s25
      %s29 = sphi 0, %s26
      %s30 = sphi 0, %s27
      %s31 = sphi 0, %s28
      %s32 = sphi 0, %s29
      %s50 = sphi 0, %s52
      %s53 = sphi 0, %s50
      %s54 = sphi 0, %s53
      %s70 = sphi 0, %s54
      %s80 = sphi 0, %s82
      %s83 = sphi 0, %s80
      %s84 = sphi 0, %s83
      %s100 = sphi 0, %s84
      %s110 = sphi 0, %s112
      %s113 = sphi 0, %s110
      %s114 = sphi 0, %s113
      %s130 = sphi 0, %s114
    $region4: #{tpu_custom_call.1} parent=1 // loop_header_branch
      %20 = sbr.rel (%p18) target = $region8
    $region5: #{tpu_custom_call.1} parent=1 // loop_body
      %s22 = ssub.s32 %s17, 1
      %s23 = ssub.s32 %s17, 2
      %s33 = sadd.s32 1, %s26
      %p34 = scmp.ge.s32.totalorder %s33, 1
      %s35 = scalar_select %p34, 0, %s33
      %s36 = sadd.s32 1, %s25
      %s37 = scalar_select %p34, %s36, %s25
      %p38 = scmp.ge.s32.totalorder %s37, 1
      %s39 = scalar_select %p38, 0, %s37
      %s40 = sadd.s32 1, %s24
      %s41 = scalar_select %p38, %s40, %s24
      %p42 = scmp.ge.s32.totalorder %s41, 2
      %s43 = scalar_select %p42, 0, %s41
      %s44 = ssub.s32 %s24, %s43
      %s45 = ssub.s32 %s25, %s39
      %s46 = sor.u32 %s44, %s45
      %s47 = ssub.s32 %s26, %s35
      %s48 = sor.u32 %s46, %s47
      %p49 = scmp.eq.s32.totalorder %s48, 0
      %s51 = sadd.s32 %s50, 1
      %s52 = scalar_select %p49, %s50, %s51
      %p55 = pneg %p49
      %p56 = scmp.eq.s32.totalorder %s17, 1
      %p57 = por %p55, %p56
      %p58 = scmp.ne.s32.totalorder %s50, %s53
      %p59 = scmp.eq.s32.totalorder %s17, 0
      %p60 = por %p58, %p59
      %p61 = scmp.ne.s32.totalorder %s50, %s53
      %p62 = scmp.eq.s32.totalorder %s22, 1
      %p63 = por %p61, %p62
      %p64 = scmp.ne.s32.totalorder %s53, %s54
      %p65 = scmp.eq.s32.totalorder %s22, 0
      %p66 = por %p64, %p65
      %p67 = scmp.ne.s32.totalorder %s53, %s54
      %p68 = scmp.eq.s32.totalorder %s23, 1
      %p69 = por %p67, %p68
      %p71 = scmp.ne.s32.totalorder %s54, %s70
      %p72 = scmp.eq.s32.totalorder %s23, 0
      %p73 = por %p71, %p72
      %s74 = ssub.s32 %s24, %s43
      %s75 = ssub.s32 %s25, %s39
      %s76 = sor.u32 %s74, %s75
      %s77 = ssub.s32 %s26, %s35
      %s78 = sor.u32 %s76, %s77
      %p79 = scmp.eq.s32.totalorder %s78, 0
      %s81 = sadd.s32 %s80, 1
      %s82 = scalar_select %p79, %s80, %s81
      %p85 = pneg %p79
      %p86 = scmp.eq.s32.totalorder %s17, 1
      %p87 = por %p85, %p86
      %p88 = scmp.ne.s32.totalorder %s80, %s83
      %p89 = scmp.eq.s32.totalorder %s17, 0
      %p90 = por %p88, %p89
      %p91 = scmp.ne.s32.totalorder %s80, %s83
      %p92 = scmp.eq.s32.totalorder %s22, 1
      %p93 = por %p91, %p92
      %p94 = scmp.ne.s32.totalorder %s83, %s84
      %p95 = scmp.eq.s32.totalorder %s22, 0
      %p96 = por %p94, %p95
      %p97 = scmp.ne.s32.totalorder %s83, %s84
      %p98 = scmp.eq.s32.totalorder %s23, 1
      %p99 = por %p97, %p98
      %p101 = scmp.ne.s32.totalorder %s84, %s100
      %p102 = scmp.eq.s32.totalorder %s23, 0
      %p103 = por %p101, %p102
      %s104 = ssub.s32 %s24, %s43
      %s105 = ssub.s32 %s25, %s39
      %s106 = sor.u32 %s104, %s105
      %s107 = ssub.s32 %s26, %s35
      %s108 = sor.u32 %s106, %s107
      %p109 = scmp.eq.s32.totalorder %s108, 0
      %s111 = sadd.s32 %s110, 1
      %s112 = scalar_select %p109, %s110, %s111
      %p115 = pneg %p109
      %p116 = scmp.eq.s32.totalorder %s17, 1
      %p117 = por %p115, %p116
      %p118 = scmp.ne.s32.totalorder %s110, %s113
      %p119 = scmp.eq.s32.totalorder %s17, 0
      %p120 = por %p118, %p119
      %p121 = scmp.ne.s32.totalorder %s110, %s113
      %p122 = scmp.eq.s32.totalorder %s22, 1
      %p123 = por %p121, %p122
      %p124 = scmp.ne.s32.totalorder %s113, %s114
      %p125 = scmp.eq.s32.totalorder %s22, 0
      %p126 = por %p124, %p125
      %p127 = scmp.ne.s32.totalorder %s113, %s114
      %p128 = scmp.eq.s32.totalorder %s23, 1
      %p129 = por %p127, %p128
      %p131 = scmp.ne.s32.totalorder %s114, %s130
      %p132 = scmp.eq.s32.totalorder %s23, 0
      %p133 = por %p131, %p132
      %p134 = scmp.le.s32.totalorder 1, %s17
      %p135 = scmp.lt.s32.totalorder %s17, 3
      %p136 = pnand %p134, %p135
      %p137 = pneg %p136
      // Predicated region
      $region9: #{tpu_custom_call.1} parent=5 // pred_check
        _
      $region10: #{tpu_custom_call.1} parent=5 // pred_check_branch
        %139 = sbr.rel (%p136) target = $region12
      $region11: #{tpu_custom_call.1} parent=5 // pred_region
        %s140 = ssub.s32 %s17, 1
      $region12: #{tpu_custom_call.1} parent=5 // pred_fallthru
        _
      %p141 = scmp.lt.s32.totalorder %s17, 2
      // Predicated region
      $region13: #{tpu_custom_call.1} parent=5 // pred_check
        %p142 = pneg %p141
      $region14: #{tpu_custom_call.1} parent=5 // pred_check_branch
        %144 = sbr.rel (%p142) target = $region16
      $region15: #{tpu_custom_call.1} parent=5 // pred_region
        // Predicated region
        $region17: #{tpu_custom_call.1} parent=15 // pred_check
          %p145 = pneg %p60
        $region18: #{tpu_custom_call.1} parent=15 // pred_check_branch
          %147 = sbr.rel (%p145) target = $region20
        $region19: #{tpu_custom_call.1} parent=15 // pred_region
          %s148 = sand.u32 %s50, 1
          %s149 = scalar_lea.sflag [#allocation3], %s148
          %s150 = sand.u32 %s50, 1
          %s151 = smul.addr %s150, 512
          %s152 = scalar_lea.vmem [#allocation2], %s151
          %s153 = smul.u32 4, %s24
          %s154 = smul.u32 16, %s25
          %s156 = ssub.s32 8192, 8192
          %157 = vsyncadd %s149, %s156
          %s158 = sadd.s32 %s26, %s154
          %s159 = smul.addr %s153, 16
          %s160 = sadd.s32 %s158, %s159
          %s161 = smul.addr %s160, 128
          %s162 = scalar_lea.hbm %s0, %s161
          %s163 = sshll.u32 %s152, 4
          %s164 = int_to_ptr.vmem [resolvable:$true] %s163
          %169 = dma.hbm_to_vmem [thread:$0]  %s162, 8192, %s164, %s149, 128, 128, 8
        $region20: #{tpu_custom_call.1} parent=15 // pred_fallthru
          _
        // Predicated region
        $region21: #{tpu_custom_call.1} parent=15 // pred_check
          %p170 = pneg %p90
        $region22: #{tpu_custom_call.1} parent=15 // pred_check_branch
          %172 = sbr.rel (%p170) target = $region24
        $region23: #{tpu_custom_call.1} parent=15 // pred_region
          %s173 = sand.u32 %s80, 1
          %s174 = scalar_lea.sflag [#allocation6], %s173
          %s175 = sand.u32 %s80, 1
          %s176 = smul.addr %s175, 512
          %s177 = scalar_lea.vmem [#allocation5], %s176
          %s178 = smul.u32 4, %s24
          %s179 = smul.u32 16, %s25
          %s181 = ssub.s32 8192, 8192
          %182 = vsyncadd %s174, %s181
          %s183 = sadd.s32 %s26, %s179
          %s184 = smul.addr %s178, 16
          %s185 = sadd.s32 %s183, %s184
          %s186 = smul.addr %s185, 128
          %s187 = scalar_lea.hbm %s1, %s186
          %s188 = sshll.u32 %s177, 4
          %s189 = int_to_ptr.vmem [resolvable:$true] %s188
          %194 = dma.hbm_to_vmem [thread:$0]  %s187, 8192, %s189, %s174, 128, 128, 8
        $region24: #{tpu_custom_call.1} parent=15 // pred_fallthru
          _
      $region16: #{tpu_custom_call.1} parent=5 // pred_fallthru
        _
      %p195 = scmp.le.s32.totalorder 1, %s17
      %p196 = scmp.lt.s32.totalorder %s17, 3
      %p197 = pnand %p195, %p196
      %p198 = pneg %p197
      // Predicated region
      $region25: #{tpu_custom_call.1} parent=5 // pred_check
        _
      $region26: #{tpu_custom_call.1} parent=5 // pred_check_branch
        %200 = sbr.rel (%p197) target = $region28
      $region27: #{tpu_custom_call.1} parent=5 // pred_region
        %s201 = ssub.s32 %s17, 1
        %s202 = sand.u32 %s53, 1
        %s203 = scalar_lea.sflag [#allocation3], %s202
        %s204 = sand.u32 %s53, 1
        %s205 = smul.addr %s204, 512
        %s206 = scalar_lea.vmem [#allocation2], %s205
        // Predicated region
        $region29: #{tpu_custom_call.1} parent=27 // pred_check
          %p207 = pneg %p66
        $region30: #{tpu_custom_call.1} parent=27 // pred_check_branch
          %209 = sbr.rel (%p207) target = $region32
        $region31: #{tpu_custom_call.1} parent=27 // pred_region
          %210 = dma.done %s203, 8192
        $region32: #{tpu_custom_call.1} parent=27 // pred_fallthru
          _
        %s211 = sand.u32 %s83, 1
        %s212 = scalar_lea.sflag [#allocation6], %s211
        %s213 = sand.u32 %s83, 1
        %s214 = smul.addr %s213, 512
        %s215 = scalar_lea.vmem [#allocation5], %s214
        // Predicated region
        $region33: #{tpu_custom_call.1} parent=27 // pred_check
          %p216 = pneg %p96
        $region34: #{tpu_custom_call.1} parent=27 // pred_check_branch
          %218 = sbr.rel (%p216) target = $region36
        $region35: #{tpu_custom_call.1} parent=27 // pred_region
          %219 = dma.done %s212, 8192
        $region36: #{tpu_custom_call.1} parent=27 // pred_fallthru
          _
        %s220 = sand.u32 %s53, 1
        %s221 = scalar_lea.sflag [#allocation3], %s220
        %s222 = sand.u32 %s53, 1
        %s223 = smul.addr %s222, 512
        %s224 = scalar_lea.vmem [#allocation2], %s223
        %p225 = pneg %p66
        %p226 = pneg %p63
        %s227 = sand.u32 %s83, 1
        %s228 = scalar_lea.sflag [#allocation6], %s227
        %s229 = sand.u32 %s83, 1
        %s230 = smul.addr %s229, 512
        %s231 = scalar_lea.vmem [#allocation5], %s230
        %p232 = pneg %p96
        %p233 = pneg %p93
        %p234 = pneg %p126
        %p235 = pneg %p123
        %s236 = sand.u32 %s113, 1
        %s237 = scalar_lea.sflag [#allocation4], %s236
        %s238 = sand.u32 %s113, 1
        %s239 = smul.addr %s238, 512
        %s240 = scalar_lea.vmem [#allocation7], %s239
        %s241 = smul.u32 4, %s27
        %s242 = smul.u32 16, %s28
        %s243 = smul.u32 4, %s27
        %s244 = smul.u32 16, %s28
        %s245 = smul.u32 4, %s27
        %s246 = smul.u32 16, %s28
        %v247 = vld [vmem:[%s206] sm:$0xff]
        %v248 = vld [vmem:[%s206 + $0x8] sm:$0xff]
        %v249 = vld [vmem:[%s206 + $0x10] sm:$0xff]
        %v250 = vld [vmem:[%s206 + $0x18] sm:$0xff]
        %v251 = vld [vmem:[%s206 + $0x20] sm:$0xff]
        %v252 = vld [vmem:[%s206 + $0x28] sm:$0xff]
        %v253 = vld [vmem:[%s206 + $0x30] sm:$0xff]
        %v254 = vld [vmem:[%s206 + $0x38] sm:$0xff]
        %v255 = vld [vmem:[%s206 + $0x40] sm:$0xff]
        %v256 = vld [vmem:[%s206 + $0x48] sm:$0xff]
        %v257 = vld [vmem:[%s206 + $0x50] sm:$0xff]
        %v258 = vld [vmem:[%s206 + $0x58] sm:$0xff]
        %v259 = vld [vmem:[%s206 + $0x60] sm:$0xff]
        %v260 = vld [vmem:[%s206 + $0x68] sm:$0xff]
        %v261 = vld [vmem:[%s206 + $0x70] sm:$0xff]
        %v262 = vld [vmem:[%s206 + $0x78] sm:$0xff]
        %v263 = vld [vmem:[%s206 + $0x80] sm:$0xff]
        %v264 = vld [vmem:[%s206 + $0x88] sm:$0xff]
        %v265 = vld [vmem:[%s206 + $0x90] sm:$0xff]
        %v266 = vld [vmem:[%s206 + $0x98] sm:$0xff]
        %v267 = vld [vmem:[%s206 + $0xa0] sm:$0xff]
        %v268 = vld [vmem:[%s206 + $0xa8] sm:$0xff]
        %v269 = vld [vmem:[%s206 + $0xb0] sm:$0xff]
        %v270 = vld [vmem:[%s206 + $0xb8] sm:$0xff]
        %v271 = vld [vmem:[%s206 + $0xc0] sm:$0xff]
        %v272 = vld [vmem:[%s206 + $0xc8] sm:$0xff]
        %v273 = vld [vmem:[%s206 + $0xd0] sm:$0xff]
        %v274 = vld [vmem:[%s206 + $0xd8] sm:$0xff]
        %v275 = vld [vmem:[%s206 + $0xe0] sm:$0xff]
        %v276 = vld [vmem:[%s206 + $0xe8] sm:$0xff]
        %v277 = vld [vmem:[%s206 + $0xf0] sm:$0xff]
        %v278 = vld [vmem:[%s206 + $0xf8] sm:$0xff]
        %v279 = vld [vmem:[%s206 + $0x100] sm:$0xff]
        %v280 = vld [vmem:[%s206 + $0x108] sm:$0xff]
        %v281 = vld [vmem:[%s206 + $0x110] sm:$0xff]
        %v282 = vld [vmem:[%s206 + $0x118] sm:$0xff]
        %v283 = vld [vmem:[%s206 + $0x120] sm:$0xff]
        %v284 = vld [vmem:[%s206 + $0x128] sm:$0xff]
        %v285 = vld [vmem:[%s206 + $0x130] sm:$0xff]
        %v286 = vld [vmem:[%s206 + $0x138] sm:$0xff]
        %v287 = vld [vmem:[%s206 + $0x140] sm:$0xff]
        %v288 = vld [vmem:[%s206 + $0x148] sm:$0xff]
        %v289 = vld [vmem:[%s206 + $0x150] sm:$0xff]
        %v290 = vld [vmem:[%s206 + $0x158] sm:$0xff]
        %v291 = vld [vmem:[%s206 + $0x160] sm:$0xff]
        %v292 = vld [vmem:[%s206 + $0x168] sm:$0xff]
        %v293 = vld [vmem:[%s206 + $0x170] sm:$0xff]
        %v294 = vld [vmem:[%s206 + $0x178] sm:$0xff]
        %v295 = vld [vmem:[%s206 + $0x180] sm:$0xff]
        %v296 = vld [vmem:[%s206 + $0x188] sm:$0xff]
        %v297 = vld [vmem:[%s206 + $0x190] sm:$0xff]
        %v298 = vld [vmem:[%s206 + $0x198] sm:$0xff]
        %v299 = vld [vmem:[%s206 + $0x1a0] sm:$0xff]
        %v300 = vld [vmem:[%s206 + $0x1a8] sm:$0xff]
        %v301 = vld [vmem:[%s206 + $0x1b0] sm:$0xff]
        %v302 = vld [vmem:[%s206 + $0x1b8] sm:$0xff]
        %v303 = vld [vmem:[%s206 + $0x1c0] sm:$0xff]
        %v304 = vld [vmem:[%s206 + $0x1c8] sm:$0xff]
        %v305 = vld [vmem:[%s206 + $0x1d0] sm:$0xff]
        %v306 = vld [vmem:[%s206 + $0x1d8] sm:$0xff]
        %v307 = vld [vmem:[%s206 + $0x1e0] sm:$0xff]
        %v308 = vld [vmem:[%s206 + $0x1e8] sm:$0xff]
        %v309 = vld [vmem:[%s206 + $0x1f0] sm:$0xff]
        %v310 = vld [vmem:[%s206 + $0x1f8] sm:$0xff]
        %v311 = vld [vmem:[%s215] sm:$0xff]
        %v312 = vld [vmem:[%s215 + $0x8] sm:$0xff]
        %v313 = vld [vmem:[%s215 + $0x10] sm:$0xff]
        %v314 = vld [vmem:[%s215 + $0x18] sm:$0xff]
        %v315 = vld [vmem:[%s215 + $0x20] sm:$0xff]
        %v316 = vld [vmem:[%s215 + $0x28] sm:$0xff]
        %v317 = vld [vmem:[%s215 + $0x30] sm:$0xff]
        %v318 = vld [vmem:[%s215 + $0x38] sm:$0xff]
        %v319 = vld [vmem:[%s215 + $0x40] sm:$0xff]
        %v320 = vld [vmem:[%s215 + $0x48] sm:$0xff]
        %v321 = vld [vmem:[%s215 + $0x50] sm:$0xff]
        %v322 = vld [vmem:[%s215 + $0x58] sm:$0xff]
        %v323 = vld [vmem:[%s215 + $0x60] sm:$0xff]
        %v324 = vld [vmem:[%s215 + $0x68] sm:$0xff]
        %v325 = vld [vmem:[%s215 + $0x70] sm:$0xff]
        %v326 = vld [vmem:[%s215 + $0x78] sm:$0xff]
        %v327 = vld [vmem:[%s215 + $0x80] sm:$0xff]
        %v328 = vld [vmem:[%s215 + $0x88] sm:$0xff]
        %v329 = vld [vmem:[%s215 + $0x90] sm:$0xff]
        %v330 = vld [vmem:[%s215 + $0x98] sm:$0xff]
        %v331 = vld [vmem:[%s215 + $0xa0] sm:$0xff]
        %v332 = vld [vmem:[%s215 + $0xa8] sm:$0xff]
        %v333 = vld [vmem:[%s215 + $0xb0] sm:$0xff]
        %v334 = vld [vmem:[%s215 + $0xb8] sm:$0xff]
        %v335 = vld [vmem:[%s215 + $0xc0] sm:$0xff]
        %v336 = vld [vmem:[%s215 + $0xc8] sm:$0xff]
        %v337 = vld [vmem:[%s215 + $0xd0] sm:$0xff]
        %v338 = vld [vmem:[%s215 + $0xd8] sm:$0xff]
        %v339 = vld [vmem:[%s215 + $0xe0] sm:$0xff]
        %v340 = vld [vmem:[%s215 + $0xe8] sm:$0xff]
        %v341 = vld [vmem:[%s215 + $0xf0] sm:$0xff]
        %v342 = vld [vmem:[%s215 + $0xf8] sm:$0xff]
        %v343 = vld [vmem:[%s215 + $0x100] sm:$0xff]
        %v344 = vld [vmem:[%s215 + $0x108] sm:$0xff]
        %v345 = vld [vmem:[%s215 + $0x110] sm:$0xff]
        %v346 = vld [vmem:[%s215 + $0x118] sm:$0xff]
        %v347 = vld [vmem:[%s215 + $0x120] sm:$0xff]
        %v348 = vld [vmem:[%s215 + $0x128] sm:$0xff]
        %v349 = vld [vmem:[%s215 + $0x130] sm:$0xff]
        %v350 = vld [vmem:[%s215 + $0x138] sm:$0xff]
        %v351 = vld [vmem:[%s215 + $0x140] sm:$0xff]
        %v352 = vld [vmem:[%s215 + $0x148] sm:$0xff]
        %v353 = vld [vmem:[%s215 + $0x150] sm:$0xff]
        %v354 = vld [vmem:[%s215 + $0x158] sm:$0xff]
        %v355 = vld [vmem:[%s215 + $0x160] sm:$0xff]
        %v356 = vld [vmem:[%s215 + $0x168] sm:$0xff]
        %v357 = vld [vmem:[%s215 + $0x170] sm:$0xff]
        %v358 = vld [vmem:[%s215 + $0x178] sm:$0xff]
        %v359 = vld [vmem:[%s215 + $0x180] sm:$0xff]
        %v360 = vld [vmem:[%s215 + $0x188] sm:$0xff]
        %v361 = vld [vmem:[%s215 + $0x190] sm:$0xff]
        %v362 = vld [vmem:[%s215 + $0x198] sm:$0xff]
        %v363 = vld [vmem:[%s215 + $0x1a0] sm:$0xff]
        %v364 = vld [vmem:[%s215 + $0x1a8] sm:$0xff]
        %v365 = vld [vmem:[%s215 + $0x1b0] sm:$0xff]
        %v366 = vld [vmem:[%s215 + $0x1b8] sm:$0xff]
        %v367 = vld [vmem:[%s215 + $0x1c0] sm:$0xff]
        %v368 = vld [vmem:[%s215 + $0x1c8] sm:$0xff]
        %v369 = vld [vmem:[%s215 + $0x1d0] sm:$0xff]
        %v370 = vld [vmem:[%s215 + $0x1d8] sm:$0xff]
        %v371 = vld [vmem:[%s215 + $0x1e0] sm:$0xff]
        %v372 = vld [vmem:[%s215 + $0x1e8] sm:$0xff]
        %v373 = vld [vmem:[%s215 + $0x1f0] sm:$0xff]
        %v374 = vld [vmem:[%s215 + $0x1f8] sm:$0xff]
        %v375 = vsub.f32 %v247, %v311
        %v376 = vsub.f32 %v248, %v312
        %v377 = vsub.f32 %v249, %v313
        %v378 = vsub.f32 %v250, %v314
        %v379 = vsub.f32 %v251, %v315
        %v380 = vsub.f32 %v252, %v316
        %v381 = vsub.f32 %v253, %v317
        %v382 = vsub.f32 %v254, %v318
        %v383 = vsub.f32 %v255, %v319
        %v384 = vsub.f32 %v256, %v320
        %v385 = vsub.f32 %v257, %v321
        %v386 = vsub.f32 %v258, %v322
        %v387 = vsub.f32 %v259, %v323
        %v388 = vsub.f32 %v260, %v324
        %v389 = vsub.f32 %v261, %v325
        %v390 = vsub.f32 %v262, %v326
        %v391 = vsub.f32 %v263, %v327
        %v392 = vsub.f32 %v264, %v328
        %v393 = vsub.f32 %v265, %v329
        %v394 = vsub.f32 %v266, %v330
        %v395 = vsub.f32 %v267, %v331
        %v396 = vsub.f32 %v268, %v332
        %v397 = vsub.f32 %v269, %v333
        %v398 = vsub.f32 %v270, %v334
        %v399 = vsub.f32 %v271, %v335
        %v400 = vsub.f32 %v272, %v336
        %v401 = vsub.f32 %v273, %v337
        %v402 = vsub.f32 %v274, %v338
        %v403 = vsub.f32 %v275, %v339
        %v404 = vsub.f32 %v276, %v340
        %v405 = vsub.f32 %v277, %v341
        %v406 = vsub.f32 %v278, %v342
        %v407 = vsub.f32 %v279, %v343
        %v408 = vsub.f32 %v280, %v344
        %v409 = vsub.f32 %v281, %v345
        %v410 = vsub.f32 %v282, %v346
        %v411 = vsub.f32 %v283, %v347
        %v412 = vsub.f32 %v284, %v348
        %v413 = vsub.f32 %v285, %v349
        %v414 = vsub.f32 %v286, %v350
        %v415 = vsub.f32 %v287, %v351
        %v416 = vsub.f32 %v288, %v352
        %v417 = vsub.f32 %v289, %v353
        %v418 = vsub.f32 %v290, %v354
        %v419 = vsub.f32 %v291, %v355
        %v420 = vsub.f32 %v292, %v356
        %v421 = vsub.f32 %v293, %v357
        %v422 = vsub.f32 %v294, %v358
        %v423 = vsub.f32 %v295, %v359
        %v424 = vsub.f32 %v296, %v360
        %v425 = vsub.f32 %v297, %v361
        %v426 = vsub.f32 %v298, %v362
        %v427 = vsub.f32 %v299, %v363
        %v428 = vsub.f32 %v300, %v364
        %v429 = vsub.f32 %v301, %v365
        %v430 = vsub.f32 %v302, %v366
        %v431 = vsub.f32 %v303, %v367
        %v432 = vsub.f32 %v304, %v368
        %v433 = vsub.f32 %v305, %v369
        %v434 = vsub.f32 %v306, %v370
        %v435 = vsub.f32 %v307, %v371
        %v436 = vsub.f32 %v308, %v372
        %v437 = vsub.f32 %v309, %v373
        %v438 = vsub.f32 %v310, %v374
        %v439 = vadd.f32 %v311, 0.0001
        %v440 = vadd.f32 %v312, 0.0001
        %v441 = vadd.f32 %v313, 0.0001
        %v442 = vadd.f32 %v314, 0.0001
        %v443 = vadd.f32 %v315, 0.0001
        %v444 = vadd.f32 %v316, 0.0001
        %v445 = vadd.f32 %v317, 0.0001
        %v446 = vadd.f32 %v318, 0.0001
        %v447 = vadd.f32 %v319, 0.0001
        %v448 = vadd.f32 %v320, 0.0001
        %v449 = vadd.f32 %v321, 0.0001
        %v450 = vadd.f32 %v322, 0.0001
        %v451 = vadd.f32 %v323, 0.0001
        %v452 = vadd.f32 %v324, 0.0001
        %v453 = vadd.f32 %v325, 0.0001
        %v454 = vadd.f32 %v326, 0.0001
        %v455 = vadd.f32 %v327, 0.0001
        %v456 = vadd.f32 %v328, 0.0001
        %v457 = vadd.f32 %v329, 0.0001
        %v458 = vadd.f32 %v330, 0.0001
        %v459 = vadd.f32 %v331, 0.0001
        %v460 = vadd.f32 %v332, 0.0001
        %v461 = vadd.f32 %v333, 0.0001
        %v462 = vadd.f32 %v334, 0.0001
        %v463 = vadd.f32 %v335, 0.0001
        %v464 = vadd.f32 %v336, 0.0001
        %v465 = vadd.f32 %v337, 0.0001
        %v466 = vadd.f32 %v338, 0.0001
        %v467 = vadd.f32 %v339, 0.0001
        %v468 = vadd.f32 %v340, 0.0001
        %v469 = vadd.f32 %v341, 0.0001
        %v470 = vadd.f32 %v342, 0.0001
        %v471 = vadd.f32 %v343, 0.0001
        %v472 = vadd.f32 %v344, 0.0001
        %v473 = vadd.f32 %v345, 0.0001
        %v474 = vadd.f32 %v346, 0.0001
        %v475 = vadd.f32 %v347, 0.0001
        %v476 = vadd.f32 %v348, 0.0001
        %v477 = vadd.f32 %v349, 0.0001
        %v478 = vadd.f32 %v350, 0.0001
        %v479 = vadd.f32 %v351, 0.0001
        %v480 = vadd.f32 %v352, 0.0001
        %v481 = vadd.f32 %v353, 0.0001
        %v482 = vadd.f32 %v354, 0.0001
        %v483 = vadd.f32 %v355, 0.0001
        %v484 = vadd.f32 %v356, 0.0001
        %v485 = vadd.f32 %v357, 0.0001
        %v486 = vadd.f32 %v358, 0.0001
        %v487 = vadd.f32 %v359, 0.0001
        %v488 = vadd.f32 %v360, 0.0001
        %v489 = vadd.f32 %v361, 0.0001
        %v490 = vadd.f32 %v362, 0.0001
        %v491 = vadd.f32 %v363, 0.0001
        %v492 = vadd.f32 %v364, 0.0001
        %v493 = vadd.f32 %v365, 0.0001
        %v494 = vadd.f32 %v366, 0.0001
        %v495 = vadd.f32 %v367, 0.0001
        %v496 = vadd.f32 %v368, 0.0001
        %v497 = vadd.f32 %v369, 0.0001
        %v498 = vadd.f32 %v370, 0.0001
        %v499 = vadd.f32 %v371, 0.0001
        %v500 = vadd.f32 %v372, 0.0001
        %v501 = vadd.f32 %v373, 0.0001
        %v502 = vadd.f32 %v374, 0.0001
        %v503 = vrcp.pop %v439
        %v504 = vmul.f32 %v375, %v503
        %v505 = vrcp.pop %v440
        %v506 = vmul.f32 %v376, %v505
        %v507 = vrcp.pop %v441
        %v508 = vmul.f32 %v377, %v507
        %v509 = vrcp.pop %v442
        %v510 = vmul.f32 %v378, %v509
        %v511 = vrcp.pop %v443
        %v512 = vmul.f32 %v379, %v511
        %v513 = vrcp.pop %v444
        %v514 = vmul.f32 %v380, %v513
        %v515 = vrcp.pop %v445
        %v516 = vmul.f32 %v381, %v515
        %v517 = vrcp.pop %v446
        %v518 = vmul.f32 %v382, %v517
        %v519 = vrcp.pop %v447
        %v520 = vmul.f32 %v383, %v519
        %v521 = vrcp.pop %v448
        %v522 = vmul.f32 %v384, %v521
        %v523 = vrcp.pop %v449
        %v524 = vmul.f32 %v385, %v523
        %v525 = vrcp.pop %v450
        %v526 = vmul.f32 %v386, %v525
        %v527 = vrcp.pop %v451
        %v528 = vmul.f32 %v387, %v527
        %v529 = vrcp.pop %v452
        %v530 = vmul.f32 %v388, %v529
        %v531 = vrcp.pop %v453
        %v532 = vmul.f32 %v389, %v531
        %v533 = vrcp.pop %v454
        %v534 = vmul.f32 %v390, %v533
        %v535 = vrcp.pop %v455
        %v536 = vmul.f32 %v391, %v535
        %v537 = vrcp.pop %v456
        %v538 = vmul.f32 %v392, %v537
        %v539 = vrcp.pop %v457
        %v540 = vmul.f32 %v393, %v539
        %v541 = vrcp.pop %v458
        %v542 = vmul.f32 %v394, %v541
        %v543 = vrcp.pop %v459
        %v544 = vmul.f32 %v395, %v543
        %v545 = vrcp.pop %v460
        %v546 = vmul.f32 %v396, %v545
        %v547 = vrcp.pop %v461
        %v548 = vmul.f32 %v397, %v547
        %v549 = vrcp.pop %v462
        %v550 = vmul.f32 %v398, %v549
        %v551 = vrcp.pop %v463
        %v552 = vmul.f32 %v399, %v551
        %v553 = vrcp.pop %v464
        %v554 = vmul.f32 %v400, %v553
        %v555 = vrcp.pop %v465
        %v556 = vmul.f32 %v401, %v555
        %v557 = vrcp.pop %v466
        %v558 = vmul.f32 %v402, %v557
        %v559 = vrcp.pop %v467
        %v560 = vmul.f32 %v403, %v559
        %v561 = vrcp.pop %v468
        %v562 = vmul.f32 %v404, %v561
        %v563 = vrcp.pop %v469
        %v564 = vmul.f32 %v405, %v563
        %v565 = vrcp.pop %v470
        %v566 = vmul.f32 %v406, %v565
        %v567 = vrcp.pop %v471
        %v568 = vmul.f32 %v407, %v567
        %v569 = vrcp.pop %v472
        %v570 = vmul.f32 %v408, %v569
        %v571 = vrcp.pop %v473
        %v572 = vmul.f32 %v409, %v571
        %v573 = vrcp.pop %v474
        %v574 = vmul.f32 %v410, %v573
        %v575 = vrcp.pop %v475
        %v576 = vmul.f32 %v411, %v575
        %v577 = vrcp.pop %v476
        %v578 = vmul.f32 %v412, %v577
        %v579 = vrcp.pop %v477
        %v580 = vmul.f32 %v413, %v579
        %v581 = vrcp.pop %v478
        %v582 = vmul.f32 %v414, %v581
        %v583 = vrcp.pop %v479
        %v584 = vmul.f32 %v415, %v583
        %v585 = vrcp.pop %v480
        %v586 = vmul.f32 %v416, %v585
        %v587 = vrcp.pop %v481
        %v588 = vmul.f32 %v417, %v587
        %v589 = vrcp.pop %v482
        %v590 = vmul.f32 %v418, %v589
        %v591 = vrcp.pop %v483
        %v592 = vmul.f32 %v419, %v591
        %v593 = vrcp.pop %v484
        %v594 = vmul.f32 %v420, %v593
        %v595 = vrcp.pop %v485
        %v596 = vmul.f32 %v421, %v595
        %v597 = vrcp.pop %v486
        %v598 = vmul.f32 %v422, %v597
        %v599 = vrcp.pop %v487
        %v600 = vmul.f32 %v423, %v599
        %v601 = vrcp.pop %v488
        %v602 = vmul.f32 %v424, %v601
        %v603 = vrcp.pop %v489
        %v604 = vmul.f32 %v425, %v603
        %v605 = vrcp.pop %v490
        %v606 = vmul.f32 %v426, %v605
        %v607 = vrcp.pop %v491
        %v608 = vmul.f32 %v427, %v607
        %v609 = vrcp.pop %v492
        %v610 = vmul.f32 %v428, %v609
        %v611 = vrcp.pop %v493
        %v612 = vmul.f32 %v429, %v611
        %v613 = vrcp.pop %v494
        %v614 = vmul.f32 %v430, %v613
        %v615 = vrcp.pop %v495
        %v616 = vmul.f32 %v431, %v615
        %v617 = vrcp.pop %v496
        %v618 = vmul.f32 %v432, %v617
        %v619 = vrcp.pop %v497
        %v620 = vmul.f32 %v433, %v619
        %v621 = vrcp.pop %v498
        %v622 = vmul.f32 %v434, %v621
        %v623 = vrcp.pop %v499
        %v624 = vmul.f32 %v435, %v623
        %v625 = vrcp.pop %v500
        %v626 = vmul.f32 %v436, %v625
        %v627 = vrcp.pop %v501
        %v628 = vmul.f32 %v437, %v627
        %v629 = vrcp.pop %v502
        %v630 = vmul.f32 %v438, %v629
        %v631 = vand.u32 2147483647, %v504
        %v632 = vand.u32 2147483647, %v506
        %v633 = vand.u32 2147483647, %v508
        %v634 = vand.u32 2147483647, %v510
        %v635 = vand.u32 2147483647, %v512
        %v636 = vand.u32 2147483647, %v514
        %v637 = vand.u32 2147483647, %v516
        %v638 = vand.u32 2147483647, %v518
        %v639 = vand.u32 2147483647, %v520
        %v640 = vand.u32 2147483647, %v522
        %v641 = vand.u32 2147483647, %v524
        %v642 = vand.u32 2147483647, %v526
        %v643 = vand.u32 2147483647, %v528
        %v644 = vand.u32 2147483647, %v530
        %v645 = vand.u32 2147483647, %v532
        %v646 = vand.u32 2147483647, %v534
        %v647 = vand.u32 2147483647, %v536
        %v648 = vand.u32 2147483647, %v538
        %v649 = vand.u32 2147483647, %v540
        %v650 = vand.u32 2147483647, %v542
        %v651 = vand.u32 2147483647, %v544
        %v652 = vand.u32 2147483647, %v546
        %v653 = vand.u32 2147483647, %v548
        %v654 = vand.u32 2147483647, %v550
        %v655 = vand.u32 2147483647, %v552
        %v656 = vand.u32 2147483647, %v554
        %v657 = vand.u32 2147483647, %v556
        %v658 = vand.u32 2147483647, %v558
        %v659 = vand.u32 2147483647, %v560
        %v660 = vand.u32 2147483647, %v562
        %v661 = vand.u32 2147483647, %v564
        %v662 = vand.u32 2147483647, %v566
        %v663 = vand.u32 2147483647, %v568
        %v664 = vand.u32 2147483647, %v570
        %v665 = vand.u32 2147483647, %v572
        %v666 = vand.u32 2147483647, %v574
        %v667 = vand.u32 2147483647, %v576
        %v668 = vand.u32 2147483647, %v578
        %v669 = vand.u32 2147483647, %v580
        %v670 = vand.u32 2147483647, %v582
        %v671 = vand.u32 2147483647, %v584
        %v672 = vand.u32 2147483647, %v586
        %v673 = vand.u32 2147483647, %v588
        %v674 = vand.u32 2147483647, %v590
        %v675 = vand.u32 2147483647, %v592
        %v676 = vand.u32 2147483647, %v594
        %v677 = vand.u32 2147483647, %v596
        %v678 = vand.u32 2147483647, %v598
        %v679 = vand.u32 2147483647, %v600
        %v680 = vand.u32 2147483647, %v602
        %v681 = vand.u32 2147483647, %v604
        %v682 = vand.u32 2147483647, %v606
        %v683 = vand.u32 2147483647, %v608
        %v684 = vand.u32 2147483647, %v610
        %v685 = vand.u32 2147483647, %v612
        %v686 = vand.u32 2147483647, %v614
        %v687 = vand.u32 2147483647, %v616
        %v688 = vand.u32 2147483647, %v618
        %v689 = vand.u32 2147483647, %v620
        %v690 = vand.u32 2147483647, %v622
        %v691 = vand.u32 2147483647, %v624
        %v692 = vand.u32 2147483647, %v626
        %v693 = vand.u32 2147483647, %v628
        %v694 = vand.u32 2147483647, %v630
        %695 = vst [vmem:[%s240] sm:$0xff] %v631
        %696 = vst [vmem:[%s240 + $0x8] sm:$0xff] %v632
        %697 = vst [vmem:[%s240 + $0x10] sm:$0xff] %v633
        %698 = vst [vmem:[%s240 + $0x18] sm:$0xff] %v634
        %699 = vst [vmem:[%s240 + $0x20] sm:$0xff] %v635
        %700 = vst [vmem:[%s240 + $0x28] sm:$0xff] %v636
        %701 = vst [vmem:[%s240 + $0x30] sm:$0xff] %v637
        %702 = vst [vmem:[%s240 + $0x38] sm:$0xff] %v638
        %703 = vst [vmem:[%s240 + $0x40] sm:$0xff] %v639
        %704 = vst [vmem:[%s240 + $0x48] sm:$0xff] %v640
        %705 = vst [vmem:[%s240 + $0x50] sm:$0xff] %v641
        %706 = vst [vmem:[%s240 + $0x58] sm:$0xff] %v642
        %707 = vst [vmem:[%s240 + $0x60] sm:$0xff] %v643
        %708 = vst [vmem:[%s240 + $0x68] sm:$0xff] %v644
        %709 = vst [vmem:[%s240 + $0x70] sm:$0xff] %v645
        %710 = vst [vmem:[%s240 + $0x78] sm:$0xff] %v646
        %711 = vst [vmem:[%s240 + $0x80] sm:$0xff] %v647
        %712 = vst [vmem:[%s240 + $0x88] sm:$0xff] %v648
        %713 = vst [vmem:[%s240 + $0x90] sm:$0xff] %v649
        %714 = vst [vmem:[%s240 + $0x98] sm:$0xff] %v650
        %715 = vst [vmem:[%s240 + $0xa0] sm:$0xff] %v651
        %716 = vst [vmem:[%s240 + $0xa8] sm:$0xff] %v652
        %717 = vst [vmem:[%s240 + $0xb0] sm:$0xff] %v653
        %718 = vst [vmem:[%s240 + $0xb8] sm:$0xff] %v654
        %719 = vst [vmem:[%s240 + $0xc0] sm:$0xff] %v655
        %720 = vst [vmem:[%s240 + $0xc8] sm:$0xff] %v656
        %721 = vst [vmem:[%s240 + $0xd0] sm:$0xff] %v657
        %722 = vst [vmem:[%s240 + $0xd8] sm:$0xff] %v658
        %723 = vst [vmem:[%s240 + $0xe0] sm:$0xff] %v659
        %724 = vst [vmem:[%s240 + $0xe8] sm:$0xff] %v660
        %725 = vst [vmem:[%s240 + $0xf0] sm:$0xff] %v661
        %726 = vst [vmem:[%s240 + $0xf8] sm:$0xff] %v662
        %727 = vst [vmem:[%s240 + $0x100] sm:$0xff] %v663
        %728 = vst [vmem:[%s240 + $0x108] sm:$0xff] %v664
        %729 = vst [vmem:[%s240 + $0x110] sm:$0xff] %v665
        %730 = vst [vmem:[%s240 + $0x118] sm:$0xff] %v666
        %731 = vst [vmem:[%s240 + $0x120] sm:$0xff] %v667
        %732 = vst [vmem:[%s240 + $0x128] sm:$0xff] %v668
        %733 = vst [vmem:[%s240 + $0x130] sm:$0xff] %v669
        %734 = vst [vmem:[%s240 + $0x138] sm:$0xff] %v670
        %735 = vst [vmem:[%s240 + $0x140] sm:$0xff] %v671
        %736 = vst [vmem:[%s240 + $0x148] sm:$0xff] %v672
        %737 = vst [vmem:[%s240 + $0x150] sm:$0xff] %v673
        %738 = vst [vmem:[%s240 + $0x158] sm:$0xff] %v674
        %739 = vst [vmem:[%s240 + $0x160] sm:$0xff] %v675
        %740 = vst [vmem:[%s240 + $0x168] sm:$0xff] %v676
        %741 = vst [vmem:[%s240 + $0x170] sm:$0xff] %v677
        %742 = vst [vmem:[%s240 + $0x178] sm:$0xff] %v678
        %743 = vst [vmem:[%s240 + $0x180] sm:$0xff] %v679
        %744 = vst [vmem:[%s240 + $0x188] sm:$0xff] %v680
        %745 = vst [vmem:[%s240 + $0x190] sm:$0xff] %v681
        %746 = vst [vmem:[%s240 + $0x198] sm:$0xff] %v682
        %747 = vst [vmem:[%s240 + $0x1a0] sm:$0xff] %v683
        %748 = vst [vmem:[%s240 + $0x1a8] sm:$0xff] %v684
        %749 = vst [vmem:[%s240 + $0x1b0] sm:$0xff] %v685
        %750 = vst [vmem:[%s240 + $0x1b8] sm:$0xff] %v686
        %751 = vst [vmem:[%s240 + $0x1c0] sm:$0xff] %v687
        %752 = vst [vmem:[%s240 + $0x1c8] sm:$0xff] %v688
        %753 = vst [vmem:[%s240 + $0x1d0] sm:$0xff] %v689
        %754 = vst [vmem:[%s240 + $0x1d8] sm:$0xff] %v690
        %755 = vst [vmem:[%s240 + $0x1e0] sm:$0xff] %v691
        %756 = vst [vmem:[%s240 + $0x1e8] sm:$0xff] %v692
        %757 = vst [vmem:[%s240 + $0x1f0] sm:$0xff] %v693
        %758 = vst [vmem:[%s240 + $0x1f8] sm:$0xff] %v694
        %s759 = sand.u32 %s113, 1
        %s760 = scalar_lea.sflag [#allocation4], %s759
        %s761 = sand.u32 %s113, 1
        %s762 = smul.addr %s761, 512
        %s763 = scalar_lea.vmem [#allocation7], %s762
        // Predicated region
        $region37: #{tpu_custom_call.1} parent=27 // pred_check
          %p764 = pneg %p123
        $region38: #{tpu_custom_call.1} parent=27 // pred_check_branch
          %766 = sbr.rel (%p764) target = $region40
        $region39: #{tpu_custom_call.1} parent=27 // pred_region
          %s767 = smul.u32 4, %s27
          %s768 = smul.u32 16, %s28
          %s770 = ssub.s32 8192, 8192
          %771 = vsyncadd %s760, %s770
          %s772 = sadd.s32 %s29, %s768
          %s773 = smul.addr %s767, 16
          %s774 = sadd.s32 %s772, %s773
          %s775 = smul.addr %s774, 128
          %s776 = scalar_lea.hbm %s2, %s775
          %s777 = sshll.u32 %s763, 4
          %s778 = int_to_ptr.vmem [resolvable:$true] %s777
          %783 = dma.vmem_to_hbm [thread:$0]  %s778, 8192, %s776, %s760, 128, 128, 8
        $region40: #{tpu_custom_call.1} parent=27 // pred_fallthru
          _
      $region28: #{tpu_custom_call.1} parent=5 // pred_fallthru
        _
      %p784 = scmp.le.s32.totalorder 2, %s17
      // Predicated region
      $region41: #{tpu_custom_call.1} parent=5 // pred_check
        %p785 = pneg %p784
      $region42: #{tpu_custom_call.1} parent=5 // pred_check_branch
        %787 = sbr.rel (%p785) target = $region44
      $region43: #{tpu_custom_call.1} parent=5 // pred_region
        %s788 = ssub.s32 %s17, 2
        // Predicated region
        $region45: #{tpu_custom_call.1} parent=43 // pred_check
          %p789 = pneg %p129
        $region46: #{tpu_custom_call.1} parent=43 // pred_check_branch
          %791 = sbr.rel (%p789) target = $region48
        $region47: #{tpu_custom_call.1} parent=43 // pred_region
          %s792 = sand.u32 %s114, 1
          %s793 = scalar_lea.sflag [#allocation4], %s792
          %s794 = sand.u32 %s114, 1
          %s795 = smul.addr %s794, 512
          %s796 = scalar_lea.vmem [#allocation7], %s795
          %797 = dma.done %s793, 8192
        $region48: #{tpu_custom_call.1} parent=43 // pred_fallthru
          _
      $region44: #{tpu_custom_call.1} parent=5 // pred_fallthru
        _
    $region6: #{tpu_custom_call.1} parent=1 // loop_footer
      %s21 = sadd.s32 1, %s17
    $region7: #{tpu_custom_call.1} parent=1 // loop_footer_branch
      %16 = sbr.rel target = $region3
    $region8: #{tpu_custom_call.1} parent=1 // loop_exit
      _
    %798 = vsyncpa [#allocation3], 1
    %s799 = scalar_lea.sflag [#allocation3], 1
    %800 = vsyncpa %s799, 1
    %801 = vsyncpa [#allocation6], 1
    %s802 = scalar_lea.sflag [#allocation6], 1
    %803 = vsyncpa %s802, 1
    %804 = vsyncpa [#allocation4], 1
    %s805 = scalar_lea.sflag [#allocation4], 1
    %806 = vsyncpa %s805, 1

</llo_original>
